<compile_context>
chip_gen: v7x
topology: tpu7x:2x2x1
jax: 0.10.0
libtpu: 0.0.40
codegen_flags: <defaults>
</compile_context>

<pallas_src>
import functools
import math

import jax
import jax.numpy as jnp
from jax.experimental import pallas as pl
from jax.experimental.pallas import tpu as pltpu


LANE_W = 512                        # lane-dense width for the padded path
MAX_TILE_ROWS = 2048                # 2048*512*4B = 4 MiB per f32 operand tile
VMEM_LIMIT_BYTES = 48 * 1024 * 1024  # 2 bufs * 3 operands * 4 MiB = 24 MiB + headroom
MIN_PALLAS_ELEMS = 4096             # below this, pure-jnp fallback is faster


def _margin_loss_kernel(lengths_ref, labels_ref, out_ref, *, m_pos, m_neg, alpha):
    # Pure VPU work; the kernel is HBM-bound, so compute in f32 regardless of
    # storage dtype (in-register casts are free under the DMA roofline).
    x = lengths_ref[...].astype(jnp.float32)
    y = labels_ref[...].astype(jnp.float32)
    left = jnp.maximum(m_pos - x, 0.0)
    left = left * left
    right = jnp.maximum(x - m_neg, 0.0)
    right = right * right
    out_ref[...] = (y * left + alpha * (1.0 - y) * right).astype(out_ref.dtype)


def _reference(lengths, labels, m_pos=0.9, m_neg=0.1, alpha=0.5):
    out_dtype = jnp.result_type(lengths.dtype, labels.dtype)
    x = lengths.astype(jnp.float32)
    y = labels.astype(jnp.float32)
    left = jnp.maximum(m_pos - x, 0.0) ** 2
    right = jnp.maximum(x - m_neg, 0.0) ** 2
    return (y * left + alpha * (1.0 - y) * right).astype(out_dtype)


def _round_up(x, m):
    return ((x + m - 1) // m) * m


def margin_loss(lengths, labels, m_pos=0.9, m_neg=0.1, alpha=0.5):
    assert lengths.shape == labels.shape
    orig_shape = lengths.shape
    total = math.prod(orig_shape)
    out_dtype = jnp.result_type(lengths.dtype, labels.dtype)

    # Small-input fallback: launch + layout plumbing would dominate.
    if total < MIN_PALLAS_ELEMS:
        return _reference(lengths, labels, m_pos, m_neg, alpha)

    # Lane-dense 2-D view.  Fast path: element count already a multiple of a
    # lane width -> contiguous reshape only (zero extra HBM traffic).
    width = None
    for w in (512, 256, 128):
        if total % w == 0:
            width = w
            break

    if width is not None:
        pad = 0
        lengths2d = jnp.reshape(lengths, (total // width, width))
        labels2d = jnp.reshape(labels, (total // width, width))
    else:
        # Odd shapes only: pad the flat view to a lane multiple.  Padded tail
        # (lengths=0, labels=0) evaluates to exactly 0 and is sliced off.
        width = LANE_W
        pad = _round_up(total, width) - total
        lengths2d = jnp.pad(jnp.ravel(lengths), (0, pad)).reshape(-1, width)
        labels2d = jnp.pad(jnp.ravel(labels), (0, pad)).reshape(-1, width)

    rows = lengths2d.shape[0]

    isz_len = jnp.dtype(lengths.dtype).itemsize
    isz_lab = jnp.dtype(labels.dtype).itemsize
    isz_out = jnp.dtype(out_dtype).itemsize
    # Row granule = native sublane tile of the narrowest operand
    # (f32 -> 8, bf16 -> 16, int8 -> 32) so packed dtypes stay tile-aligned.
    row_granule = max(8, 8 * (4 // min(isz_len, isz_lab, isz_out)))

    # Tile rows: as large as the VMEM budget allows, but keep >= 2 balanced
    # grid steps so both v7x TensorCores get work (harmless on v5e/v6e).
    if rows > row_granule:
        nsteps = max(2, pl.cdiv(rows, MAX_TILE_ROWS))
    else:
        nsteps = 1
    tile_r = min(rows, _round_up(pl.cdiv(rows, nsteps), row_granule))
    grid = (pl.cdiv(rows, tile_r),)

    kernel = functools.partial(
        _margin_loss_kernel,
        m_pos=float(m_pos), m_neg=float(m_neg), alpha=float(alpha),
    )

    out2d = pl.pallas_call(
        kernel,
        out_shape=jax.ShapeDtypeStruct((rows, width), out_dtype),
        grid=grid,
        in_specs=[
            pl.BlockSpec((tile_r, width), lambda i: (i, 0)),
            pl.BlockSpec((tile_r, width), lambda i: (i, 0)),
        ],
        out_specs=pl.BlockSpec((tile_r, width), lambda i: (i, 0)),
        compiler_params=pltpu.CompilerParams(
            dimension_semantics=("parallel",),
            vmem_limit_bytes=VMEM_LIMIT_BYTES,
        ),
        cost_estimate=pl.CostEstimate(
            flops=6 * rows * width,
            transcendentals=0,
            bytes_accessed=rows * width * (isz_len + isz_lab + isz_out),
        ),
    )(lengths2d, labels2d)

    if pad:
        return jnp.ravel(out2d)[:total].reshape(orig_shape)
    return out2d.reshape(orig_shape)


if __name__ == "__main__":
    key = jax.random.PRNGKey(0)
    k1, k2, k3, k4, k5, k6 = jax.random.split(key, 6)

    # Case A: aligned fast path (zero-copy reshape); int8 one-hot labels
    # exercise the narrow-label path (4x less label HBM read traffic).
    batch_a, classes_a = 256, 128
    lengths_a = jax.random.uniform(k1, (batch_a, classes_a), dtype=jnp.float32)
    labels_a = jax.nn.one_hot(
        jax.random.randint(k2, (batch_a,), 0, classes_a), classes_a, dtype=jnp.int8)
    out_a = jax.block_until_ready(margin_loss(lengths_a, labels_a))
    ref_a = _reference(lengths_a, labels_a)
    assert out_a.shape == lengths_a.shape and out_a.dtype == ref_a.dtype
    assert jnp.allclose(out_a, ref_a, atol=1e-6, rtol=1e-6)

    # Case B: unaligned shape -> padded backstop path, soft float labels.
    lengths_b = jax.random.uniform(k3, (130, 37), dtype=jnp.float32)
    labels_b = jax.random.uniform(k4, (130, 37), dtype=jnp.float32)
    out_b = jax.block_until_ready(margin_loss(lengths_b, labels_b))
    assert jnp.allclose(out_b, _reference(lengths_b, labels_b), atol=1e-6, rtol=1e-6)

    # Case C: tiny input -> pure-jnp fallback (no kernel launch).
    lengths_c = jax.random.uniform(k5, (8, 16), dtype=jnp.float32)
    labels_c = jax.nn.one_hot(jax.random.randint(k6, (8,), 0, 16), 16, dtype=jnp.float32)
    out_c = jax.block_until_ready(margin_loss(lengths_c, labels_c))
    assert jnp.allclose(out_c, _reference(lengths_c, labels_c), atol=1e-6, rtol=1e-6)

    print("KERNEL_OK")
</pallas_src>

<mosaic_0001>
module attributes {stable_mosaic.version = 11 : i64} {
  func.func @_margin_loss_kernel(%arg0: i32, %arg1: memref<32x512xf32, #tpu.memory_space<vmem>>, %arg2: memref<32x512xi8, #tpu.memory_space<vmem>>, %arg3: memref<32x512xf32, #tpu.memory_space<vmem>>) attributes {dimension_semantics = [#tpu.dimension_semantics<parallel>], iteration_bounds = array<i64: 2>, scalar_prefetch = 0 : i64, scratch_operands = 0 : i64, tpu.core_type = #tpu.core_type<tc>, window_params = [{transform_indices = @transform_0, window_bounds = array<i64: 32, 512>}, {transform_indices = @transform_1, window_bounds = array<i64: 32, 512>}, {transform_indices = @transform_2, window_bounds = array<i64: 32, 512>}]} {
    %c0 = arith.constant 0 : index
    %c0_0 = arith.constant 0 : index
    %0 = vector.load %arg1[%c0, %c0_0] : memref<32x512xf32, #tpu.memory_space<vmem>>, vector<32x512xf32>
    %c0_1 = arith.constant 0 : index
    %c0_2 = arith.constant 0 : index
    %1 = vector.load %arg2[%c0_1, %c0_2] : memref<32x512xi8, #tpu.memory_space<vmem>>, vector<32x512xi8>
    %2 = arith.sitofp %1 : vector<32x512xi8> to vector<32x512xf32>
    %cst = arith.constant 0.899999976 : f32
    %3 = vector.broadcast %cst : f32 to vector<32x512xf32>
    %4 = arith.subf %3, %0 : vector<32x512xf32>
    %cst_3 = arith.constant 0.000000e+00 : f32
    %5 = vector.broadcast %cst_3 : f32 to vector<32x512xf32>
    %6 = arith.maximumf %4, %5 : vector<32x512xf32>
    %7 = arith.mulf %6, %6 : vector<32x512xf32>
    %cst_4 = arith.constant 1.000000e-01 : f32
    %8 = vector.broadcast %cst_4 : f32 to vector<32x512xf32>
    %9 = arith.subf %0, %8 : vector<32x512xf32>
    %cst_5 = arith.constant 0.000000e+00 : f32
    %10 = vector.broadcast %cst_5 : f32 to vector<32x512xf32>
    %11 = arith.maximumf %9, %10 : vector<32x512xf32>
    %12 = arith.mulf %11, %11 : vector<32x512xf32>
    %13 = arith.mulf %2, %7 : vector<32x512xf32>
    %cst_6 = arith.constant 1.000000e+00 : f32
    %14 = vector.broadcast %cst_6 : f32 to vector<32x512xf32>
    %15 = arith.subf %14, %2 : vector<32x512xf32>
    %cst_7 = arith.constant 5.000000e-01 : f32
    %16 = vector.broadcast %cst_7 : f32 to vector<32x512xf32>
    %17 = arith.mulf %16, %15 : vector<32x512xf32>
    %18 = arith.mulf %17, %12 : vector<32x512xf32>
    %19 = arith.addf %13, %18 : vector<32x512xf32>
    %c0_8 = arith.constant 0 : index
    %c0_9 = arith.constant 0 : index
    %20 = vector.load %arg3[%c0_8, %c0_9] : memref<32x512xf32, #tpu.memory_space<vmem>>, vector<32x512xf32>
    tpu.vector_store %arg3[%c0_8, %c0_9], %19 {strides = array<i32>} : memref<32x512xf32, #tpu.memory_space<vmem>>, vector<32x512xf32>,
    return
  }
  func.func @transform_0(%arg0: i32) -> (i32, i32) {
    %c0_i32 = arith.constant 0 : i32
    %c0_i32_0 = arith.constant 0 : i32
    return %arg0, %c0_i32 : i32, i32
  }
  func.func @transform_1(%arg0: i32) -> (i32, i32) {
    %c0_i32 = arith.constant 0 : i32
    %c0_i32_0 = arith.constant 0 : i32
    return %arg0, %c0_i32 : i32, i32
  }
  func.func @transform_2(%arg0: i32) -> (i32, i32) {
    %c0_i32 = arith.constant 0 : i32
    %c0_i32_0 = arith.constant 0 : i32
    return %arg0, %c0_i32 : i32, i32
  }
}

</mosaic_0001>

<llo_original>
// kernel: tpu_custom_call.1
$region0: #{tpu_custom_call.1}
  #allocation0 [shape = 'u32[]', space=smem, size = 0x4, offset = 0x4, fixed_abs, tag = 'smem constant byte address 0x4 - core index']
  #allocation1 [shape = 'u32[144,128]{1,0:T(1,128)}', space=vmem, size = 0x12000, scoped, tag = 'internal scratch']
  %s0 = inlined_call_operand.hbm [shape: f32[64,512], index: 0, kind: input, shape index: {}]
  %s1 = inlined_call_operand.hbm [shape: s8[64,512], index: 1, kind: input, shape index: {}]
  %s2 = inlined_call_operand.hbm [shape: f32[64,512], index: 2, kind: output, shape index: {}]
  %s3 = sld [smem:[#allocation0]]
  $region49: #{tpu_custom_call.1} parent=0
    _
  %s5 = ssub.s32 1, %s3
  %s6 = scalar_select 0, %s5, %s3
  $region1: #{tpu_custom_call.1} parent=0
    #allocation2 [shape = 'u8[131072]{0}', space=vmem, size = 0x20000, scoped, tag = 'input window, operand 0']
    #allocation3 [shape = 's32[2]{0}', space=sflag, size = 0x8, scoped, tag = 'scoped memory for tpu_custom_call.1']
    #allocation4 [shape = 's32[2]{0}', space=sflag, size = 0x8, scoped, tag = 'scoped memory for tpu_custom_call.1']
    #allocation5 [shape = 'u8[32768]{0}', space=vmem, size = 0x8000, scoped, tag = 'input window, operand 1']
    #allocation6 [shape = 's32[2]{0}', space=sflag, size = 0x8, scoped, tag = 'scoped memory for tpu_custom_call.1']
    #allocation7 [shape = 'u8[131072]{0}', space=vmem, size = 0x20000, scoped, tag = 'output window, operand 0']
    %7 = vsyncpa [#allocation3], 0
    %s8 = scalar_lea.sflag [#allocation3], 1
    %9 = vsyncpa %s8, 0
    %10 = vsyncpa [#allocation6], 0
    %s11 = scalar_lea.sflag [#allocation6], 1
    %12 = vsyncpa %s11, 0
    %13 = vsyncpa [#allocation4], 0
    %s14 = scalar_lea.sflag [#allocation4], 1
    %15 = vsyncpa %s14, 0
    loop: start=0, step=1, limit=4
    $region2: #{tpu_custom_call.1} parent=1 // loop_pre_header
      _
    $region3: #{tpu_custom_call.1} parent=1 // loop_header
      %s17 = sphi 0, %s21
      %p18 = scmp.ge.s32.totalorder %s17, 4
      %s27 = sphi 0, %s29
      %s30 = sphi 0, %s27
      %s31 = sphi 0, %s30
      %s47 = sphi 0, %s31
      %s53 = sphi 0, %s55
      %s56 = sphi 0, %s53
      %s57 = sphi 0, %s56
      %s73 = sphi 0, %s57
      %s79 = sphi 0, %s81
      %s82 = sphi 0, %s79
      %s83 = sphi 0, %s82
      %s99 = sphi 0, %s83
    $region4: #{tpu_custom_call.1} parent=1 // loop_header_branch
      %20 = sbr.rel (%p18) target = $region8
    $region5: #{tpu_custom_call.1} parent=1 // loop_body
      %s22 = ssub.s32 %s17, 1
      %s23 = ssub.s32 %s17, 2
      %s24 = sadd.s32 %s17, 1
      %s25 = ssub.s32 %s17, %s24
      %p26 = scmp.eq.s32.totalorder %s25, 0
      %s28 = sadd.s32 %s27, 1
      %s29 = scalar_select %p26, %s27, %s28
      %p32 = pneg %p26
      %p33 = scmp.eq.s32.totalorder %s17, 1
      %p34 = por %p32, %p33
      %p35 = scmp.ne.s32.totalorder %s27, %s30
      %p36 = scmp.eq.s32.totalorder %s17, 0
      %p37 = por %p35, %p36
      %p38 = scmp.ne.s32.totalorder %s27, %s30
      %p39 = scmp.eq.s32.totalorder %s22, 1
      %p40 = por %p38, %p39
      %p41 = scmp.ne.s32.totalorder %s30, %s31
      %p42 = scmp.eq.s32.totalorder %s22, 0
      %p43 = por %p41, %p42
      %p44 = scmp.ne.s32.totalorder %s30, %s31
      %p45 = scmp.eq.s32.totalorder %s23, 1
      %p46 = por %p44, %p45
      %p48 = scmp.ne.s32.totalorder %s31, %s47
      %p49 = scmp.eq.s32.totalorder %s23, 0
      %p50 = por %p48, %p49
      %s51 = ssub.s32 %s17, %s24
      %p52 = scmp.eq.s32.totalorder %s51, 0
      %s54 = sadd.s32 %s53, 1
      %s55 = scalar_select %p52, %s53, %s54
      %p58 = pneg %p52
      %p59 = scmp.eq.s32.totalorder %s17, 1
      %p60 = por %p58, %p59
      %p61 = scmp.ne.s32.totalorder %s53, %s56
      %p62 = scmp.eq.s32.totalorder %s17, 0
      %p63 = por %p61, %p62
      %p64 = scmp.ne.s32.totalorder %s53, %s56
      %p65 = scmp.eq.s32.totalorder %s22, 1
      %p66 = por %p64, %p65
      %p67 = scmp.ne.s32.totalorder %s56, %s57
      %p68 = scmp.eq.s32.totalorder %s22, 0
      %p69 = por %p67, %p68
      %p70 = scmp.ne.s32.totalorder %s56, %s57
      %p71 = scmp.eq.s32.totalorder %s23, 1
      %p72 = por %p70, %p71
      %p74 = scmp.ne.s32.totalorder %s57, %s73
      %p75 = scmp.eq.s32.totalorder %s23, 0
      %p76 = por %p74, %p75
      %s77 = ssub.s32 %s17, %s24
      %p78 = scmp.eq.s32.totalorder %s77, 0
      %s80 = sadd.s32 %s79, 1
      %s81 = scalar_select %p78, %s79, %s80
      %p84 = pneg %p78
      %p85 = scmp.eq.s32.totalorder %s17, 1
      %p86 = por %p84, %p85
      %p87 = scmp.ne.s32.totalorder %s79, %s82
      %p88 = scmp.eq.s32.totalorder %s17, 0
      %p89 = por %p87, %p88
      %p90 = scmp.ne.s32.totalorder %s79, %s82
      %p91 = scmp.eq.s32.totalorder %s22, 1
      %p92 = por %p90, %p91
      %p93 = scmp.ne.s32.totalorder %s82, %s83
      %p94 = scmp.eq.s32.totalorder %s22, 0
      %p95 = por %p93, %p94
      %p96 = scmp.ne.s32.totalorder %s82, %s83
      %p97 = scmp.eq.s32.totalorder %s23, 1
      %p98 = por %p96, %p97
      %p100 = scmp.ne.s32.totalorder %s83, %s99
      %p101 = scmp.eq.s32.totalorder %s23, 0
      %p102 = por %p100, %p101
      %p103 = scmp.le.s32.totalorder 1, %s17
      %p104 = scmp.lt.s32.totalorder %s17, 3
      %p105 = pnand %p103, %p104
      %p106 = pneg %p105
      // Predicated region
      $region9: #{tpu_custom_call.1} parent=5 // pred_check
        _
      $region10: #{tpu_custom_call.1} parent=5 // pred_check_branch
        %108 = sbr.rel (%p105) target = $region12
      $region11: #{tpu_custom_call.1} parent=5 // pred_region
        %s109 = ssub.s32 %s17, 1
      $region12: #{tpu_custom_call.1} parent=5 // pred_fallthru
        _
      %p110 = scmp.lt.s32.totalorder %s17, 2
      // Predicated region
      $region13: #{tpu_custom_call.1} parent=5 // pred_check
        %p111 = pneg %p110
      $region14: #{tpu_custom_call.1} parent=5 // pred_check_branch
        %113 = sbr.rel (%p111) target = $region16
      $region15: #{tpu_custom_call.1} parent=5 // pred_region
        // Predicated region
        $region17: #{tpu_custom_call.1} parent=15 // pred_check
          %p114 = pneg %p37
        $region18: #{tpu_custom_call.1} parent=15 // pred_check_branch
          %116 = sbr.rel (%p114) target = $region20
        $region19: #{tpu_custom_call.1} parent=15 // pred_region
          %s117 = sand.u32 %s27, 1
          %s118 = scalar_lea.sflag [#allocation3], %s117
          %s119 = sand.u32 %s27, 1
          %s120 = smul.addr %s119, 128
          %s121 = scalar_lea.vmem [#allocation2], %s120
          %s122 = smul.u32 4, %s17
          %s124 = ssub.s32 2048, 2048
          %125 = vsyncadd %s118, %s124
          %s126 = smul.addr %s122, 4
          %s127 = smul.addr %s126, 128
          %s128 = scalar_lea.hbm %s0, %s127
          %s129 = sshll.u32 %s121, 4
          %s130 = int_to_ptr.vmem [resolvable:$true] %s129
          %135 = dma.hbm_to_vmem [thread:$0]  %s128, 2048, %s130, %s118, 512, 512, 32
        $region20: #{tpu_custom_call.1} parent=15 // pred_fallthru
          _
        // Predicated region
        $region21: #{tpu_custom_call.1} parent=15 // pred_check
          %p136 = pneg %p63
        $region22: #{tpu_custom_call.1} parent=15 // pred_check_branch
          %138 = sbr.rel (%p136) target = $region24
        $region23: #{tpu_custom_call.1} parent=15 // pred_region
          %s139 = sand.u32 %s53, 1
          %s140 = scalar_lea.sflag [#allocation6], %s139
          %s141 = sand.u32 %s53, 1
          %s142 = smul.addr %s141, 32
          %s143 = scalar_lea.vmem [#allocation5], %s142
          %s145 = ssub.s32 512, 512
          %146 = vsyncadd %s140, %s145
          %s147 = smul.addr %s17, 4
          %s148 = smul.addr %s147, 128
          %s149 = scalar_lea.hbm %s1, %s148
          %s151 = sshll.u32 %s143, 4
          %s152 = int_to_ptr.vmem [resolvable:$true] %s151
          %154 = dma.hbm_to_vmem [thread:$0]  %s149, 512, %s152, %s140
        $region24: #{tpu_custom_call.1} parent=15 // pred_fallthru
          _
      $region16: #{tpu_custom_call.1} parent=5 // pred_fallthru
        _
      %p155 = scmp.le.s32.totalorder 1, %s17
      %p156 = scmp.lt.s32.totalorder %s17, 3
      %p157 = pnand %p155, %p156
      %p158 = pneg %p157
      // Predicated region
      $region25: #{tpu_custom_call.1} parent=5 // pred_check
        _
      $region26: #{tpu_custom_call.1} parent=5 // pred_check_branch
        %160 = sbr.rel (%p157) target = $region28
      $region27: #{tpu_custom_call.1} parent=5 // pred_region
        %s161 = ssub.s32 %s17, 1
        %s162 = sand.u32 %s30, 1
        %s163 = scalar_lea.sflag [#allocation3], %s162
        %s164 = sand.u32 %s30, 1
        %s165 = smul.addr %s164, 128
        %s166 = scalar_lea.vmem [#allocation2], %s165
        // Predicated region
        $region29: #{tpu_custom_call.1} parent=27 // pred_check
          %p167 = pneg %p43
        $region30: #{tpu_custom_call.1} parent=27 // pred_check_branch
          %169 = sbr.rel (%p167) target = $region32
        $region31: #{tpu_custom_call.1} parent=27 // pred_region
          %170 = dma.done %s163, 2048
        $region32: #{tpu_custom_call.1} parent=27 // pred_fallthru
          _
        %s171 = sand.u32 %s56, 1
        %s172 = scalar_lea.sflag [#allocation6], %s171
        %s173 = sand.u32 %s56, 1
        %s174 = smul.addr %s173, 32
        %s175 = scalar_lea.vmem [#allocation5], %s174
        // Predicated region
        $region33: #{tpu_custom_call.1} parent=27 // pred_check
          %p176 = pneg %p69
        $region34: #{tpu_custom_call.1} parent=27 // pred_check_branch
          %178 = sbr.rel (%p176) target = $region36
        $region35: #{tpu_custom_call.1} parent=27 // pred_region
          %179 = dma.done %s172, 512
        $region36: #{tpu_custom_call.1} parent=27 // pred_fallthru
          _
        %s180 = sand.u32 %s30, 1
        %s181 = scalar_lea.sflag [#allocation3], %s180
        %s182 = sand.u32 %s30, 1
        %s183 = smul.addr %s182, 128
        %s184 = scalar_lea.vmem [#allocation2], %s183
        %p185 = pneg %p43
        %p186 = pneg %p40
        %s187 = sand.u32 %s56, 1
        %s188 = scalar_lea.sflag [#allocation6], %s187
        %s189 = sand.u32 %s56, 1
        %s190 = smul.addr %s189, 32
        %s191 = scalar_lea.vmem [#allocation5], %s190
        %p192 = pneg %p69
        %p193 = pneg %p66
        %p194 = pneg %p95
        %p195 = pneg %p92
        %s196 = sand.u32 %s82, 1
        %s197 = scalar_lea.sflag [#allocation4], %s196
        %s198 = sand.u32 %s82, 1
        %s199 = smul.addr %s198, 128
        %s200 = scalar_lea.vmem [#allocation7], %s199
        %s201 = smul.u32 4, %s22
        %s202 = smul.u32 4, %s22
        %v203 = vld [vmem:[%s166] sm:$0xff]
        %v204 = vld [vmem:[%s166 + $0x8] sm:$0xff]
        %v205 = vld [vmem:[%s166 + $0x10] sm:$0xff]
        %v206 = vld [vmem:[%s166 + $0x18] sm:$0xff]
        %v207 = vld [vmem:[%s166 + $0x20] sm:$0xff]
        %v208 = vld [vmem:[%s166 + $0x28] sm:$0xff]
        %v209 = vld [vmem:[%s166 + $0x30] sm:$0xff]
        %v210 = vld [vmem:[%s166 + $0x38] sm:$0xff]
        %v211 = vld [vmem:[%s166 + $0x40] sm:$0xff]
        %v212 = vld [vmem:[%s166 + $0x48] sm:$0xff]
        %v213 = vld [vmem:[%s166 + $0x50] sm:$0xff]
        %v214 = vld [vmem:[%s166 + $0x58] sm:$0xff]
        %v215 = vld [vmem:[%s166 + $0x60] sm:$0xff]
        %v216 = vld [vmem:[%s166 + $0x68] sm:$0xff]
        %v217 = vld [vmem:[%s166 + $0x70] sm:$0xff]
        %v218 = vld [vmem:[%s166 + $0x78] sm:$0xff]
        %v219 = vld [vmem:[%s175] sm:$0xff]
        %v220 = vld [vmem:[%s175 + $0x8] sm:$0xff]
        %v221 = vld [vmem:[%s175 + $0x10] sm:$0xff]
        %v222 = vld [vmem:[%s175 + $0x18] sm:$0xff]
        %v223 = vunpack.c.0.s8 %v219
        %v224 = vunpack.c.0.s8 %v220
        %v225 = vunpack.c.0.s8 %v221
        %v226 = vunpack.c.0.s8 %v222
        %v227 = vunpack.c.1.s8 %v219
        %v228 = vunpack.c.1.s8 %v220
        %v229 = vunpack.c.1.s8 %v221
        %v230 = vunpack.c.1.s8 %v222
        %v231 = vunpack.c.2.s8 %v219
        %v232 = vunpack.c.2.s8 %v220
        %v233 = vunpack.c.2.s8 %v221
        %v234 = vunpack.c.2.s8 %v222
        %v235 = vunpack.c.3.s8 %v219
        %v236 = vunpack.c.3.s8 %v220
        %v237 = vunpack.c.3.s8 %v221
        %v238 = vunpack.c.3.s8 %v222
        %v239 = vcvt.s32.f32 %v223
        %v240 = vcvt.s32.f32 %v224
        %v241 = vcvt.s32.f32 %v225
        %v242 = vcvt.s32.f32 %v226
        %v243 = vcvt.s32.f32 %v227
        %v244 = vcvt.s32.f32 %v228
        %v245 = vcvt.s32.f32 %v229
        %v246 = vcvt.s32.f32 %v230
        %v247 = vcvt.s32.f32 %v231
        %v248 = vcvt.s32.f32 %v232
        %v249 = vcvt.s32.f32 %v233
        %v250 = vcvt.s32.f32 %v234
        %v251 = vcvt.s32.f32 %v235
        %v252 = vcvt.s32.f32 %v236
        %v253 = vcvt.s32.f32 %v237
        %v254 = vcvt.s32.f32 %v238
        %v255 = vsub.f32 0.9, %v203
        %v256 = vsub.f32 0.9, %v204
        %v257 = vsub.f32 0.9, %v205
        %v258 = vsub.f32 0.9, %v206
        %v259 = vsub.f32 0.9, %v207
        %v260 = vsub.f32 0.9, %v208
        %v261 = vsub.f32 0.9, %v209
        %v262 = vsub.f32 0.9, %v210
        %v263 = vsub.f32 0.9, %v211
        %v264 = vsub.f32 0.9, %v212
        %v265 = vsub.f32 0.9, %v213
        %v266 = vsub.f32 0.9, %v214
        %v267 = vsub.f32 0.9, %v215
        %v268 = vsub.f32 0.9, %v216
        %v269 = vsub.f32 0.9, %v217
        %v270 = vsub.f32 0.9, %v218
        %v271 = vmax.f32 %v255, 0.0
        %v272 = vmax.f32 %v256, 0.0
        %v273 = vmax.f32 %v257, 0.0
        %v274 = vmax.f32 %v258, 0.0
        %v275 = vmax.f32 %v259, 0.0
        %v276 = vmax.f32 %v260, 0.0
        %v277 = vmax.f32 %v261, 0.0
        %v278 = vmax.f32 %v262, 0.0
        %v279 = vmax.f32 %v263, 0.0
        %v280 = vmax.f32 %v264, 0.0
        %v281 = vmax.f32 %v265, 0.0
        %v282 = vmax.f32 %v266, 0.0
        %v283 = vmax.f32 %v267, 0.0
        %v284 = vmax.f32 %v268, 0.0
        %v285 = vmax.f32 %v269, 0.0
        %v286 = vmax.f32 %v270, 0.0
        %v287 = vmul.f32 %v271, %v271
        %v288 = vmul.f32 %v272, %v272
        %v289 = vmul.f32 %v273, %v273
        %v290 = vmul.f32 %v274, %v274
        %v291 = vmul.f32 %v275, %v275
        %v292 = vmul.f32 %v276, %v276
        %v293 = vmul.f32 %v277, %v277
        %v294 = vmul.f32 %v278, %v278
        %v295 = vmul.f32 %v279, %v279
        %v296 = vmul.f32 %v280, %v280
        %v297 = vmul.f32 %v281, %v281
        %v298 = vmul.f32 %v282, %v282
        %v299 = vmul.f32 %v283, %v283
        %v300 = vmul.f32 %v284, %v284
        %v301 = vmul.f32 %v285, %v285
        %v302 = vmul.f32 %v286, %v286
        %v303 = vsub.f32 %v203, 0.1
        %v304 = vsub.f32 %v204, 0.1
        %v305 = vsub.f32 %v205, 0.1
        %v306 = vsub.f32 %v206, 0.1
        %v307 = vsub.f32 %v207, 0.1
        %v308 = vsub.f32 %v208, 0.1
        %v309 = vsub.f32 %v209, 0.1
        %v310 = vsub.f32 %v210, 0.1
        %v311 = vsub.f32 %v211, 0.1
        %v312 = vsub.f32 %v212, 0.1
        %v313 = vsub.f32 %v213, 0.1
        %v314 = vsub.f32 %v214, 0.1
        %v315 = vsub.f32 %v215, 0.1
        %v316 = vsub.f32 %v216, 0.1
        %v317 = vsub.f32 %v217, 0.1
        %v318 = vsub.f32 %v218, 0.1
        %v319 = vmax.f32 %v303, 0.0
        %v320 = vmax.f32 %v304, 0.0
        %v321 = vmax.f32 %v305, 0.0
        %v322 = vmax.f32 %v306, 0.0
        %v323 = vmax.f32 %v307, 0.0
        %v324 = vmax.f32 %v308, 0.0
        %v325 = vmax.f32 %v309, 0.0
        %v326 = vmax.f32 %v310, 0.0
        %v327 = vmax.f32 %v311, 0.0
        %v328 = vmax.f32 %v312, 0.0
        %v329 = vmax.f32 %v313, 0.0
        %v330 = vmax.f32 %v314, 0.0
        %v331 = vmax.f32 %v315, 0.0
        %v332 = vmax.f32 %v316, 0.0
        %v333 = vmax.f32 %v317, 0.0
        %v334 = vmax.f32 %v318, 0.0
        %v335 = vmul.f32 %v319, %v319
        %v336 = vmul.f32 %v320, %v320
        %v337 = vmul.f32 %v321, %v321
        %v338 = vmul.f32 %v322, %v322
        %v339 = vmul.f32 %v323, %v323
        %v340 = vmul.f32 %v324, %v324
        %v341 = vmul.f32 %v325, %v325
        %v342 = vmul.f32 %v326, %v326
        %v343 = vmul.f32 %v327, %v327
        %v344 = vmul.f32 %v328, %v328
        %v345 = vmul.f32 %v329, %v329
        %v346 = vmul.f32 %v330, %v330
        %v347 = vmul.f32 %v331, %v331
        %v348 = vmul.f32 %v332, %v332
        %v349 = vmul.f32 %v333, %v333
        %v350 = vmul.f32 %v334, %v334
        %v351 = vmul.f32 %v239, %v287
        %v352 = vmul.f32 %v240, %v288
        %v353 = vmul.f32 %v241, %v289
        %v354 = vmul.f32 %v242, %v290
        %v355 = vmul.f32 %v243, %v291
        %v356 = vmul.f32 %v244, %v292
        %v357 = vmul.f32 %v245, %v293
        %v358 = vmul.f32 %v246, %v294
        %v359 = vmul.f32 %v247, %v295
        %v360 = vmul.f32 %v248, %v296
        %v361 = vmul.f32 %v249, %v297
        %v362 = vmul.f32 %v250, %v298
        %v363 = vmul.f32 %v251, %v299
        %v364 = vmul.f32 %v252, %v300
        %v365 = vmul.f32 %v253, %v301
        %v366 = vmul.f32 %v254, %v302
        %v367 = vsub.f32 1.0, %v239
        %v368 = vsub.f32 1.0, %v240
        %v369 = vsub.f32 1.0, %v241
        %v370 = vsub.f32 1.0, %v242
        %v371 = vsub.f32 1.0, %v243
        %v372 = vsub.f32 1.0, %v244
        %v373 = vsub.f32 1.0, %v245
        %v374 = vsub.f32 1.0, %v246
        %v375 = vsub.f32 1.0, %v247
        %v376 = vsub.f32 1.0, %v248
        %v377 = vsub.f32 1.0, %v249
        %v378 = vsub.f32 1.0, %v250
        %v379 = vsub.f32 1.0, %v251
        %v380 = vsub.f32 1.0, %v252
        %v381 = vsub.f32 1.0, %v253
        %v382 = vsub.f32 1.0, %v254
        %v383 = vmul.f32 %v367, 0.5
        %v384 = vmul.f32 %v368, 0.5
        %v385 = vmul.f32 %v369, 0.5
        %v386 = vmul.f32 %v370, 0.5
        %v387 = vmul.f32 %v371, 0.5
        %v388 = vmul.f32 %v372, 0.5
        %v389 = vmul.f32 %v373, 0.5
        %v390 = vmul.f32 %v374, 0.5
        %v391 = vmul.f32 %v375, 0.5
        %v392 = vmul.f32 %v376, 0.5
        %v393 = vmul.f32 %v377, 0.5
        %v394 = vmul.f32 %v378, 0.5
        %v395 = vmul.f32 %v379, 0.5
        %v396 = vmul.f32 %v380, 0.5
        %v397 = vmul.f32 %v381, 0.5
        %v398 = vmul.f32 %v382, 0.5
        %v399 = vmul.f32 %v383, %v335
        %v400 = vmul.f32 %v384, %v336
        %v401 = vmul.f32 %v385, %v337
        %v402 = vmul.f32 %v386, %v338
        %v403 = vmul.f32 %v387, %v339
        %v404 = vmul.f32 %v388, %v340
        %v405 = vmul.f32 %v389, %v341
        %v406 = vmul.f32 %v390, %v342
        %v407 = vmul.f32 %v391, %v343
        %v408 = vmul.f32 %v392, %v344
        %v409 = vmul.f32 %v393, %v345
        %v410 = vmul.f32 %v394, %v346
        %v411 = vmul.f32 %v395, %v347
        %v412 = vmul.f32 %v396, %v348
        %v413 = vmul.f32 %v397, %v349
        %v414 = vmul.f32 %v398, %v350
        %v415 = vadd.f32 %v351, %v399
        %v416 = vadd.f32 %v352, %v400
        %v417 = vadd.f32 %v353, %v401
        %v418 = vadd.f32 %v354, %v402
        %v419 = vadd.f32 %v355, %v403
        %v420 = vadd.f32 %v356, %v404
        %v421 = vadd.f32 %v357, %v405
        %v422 = vadd.f32 %v358, %v406
        %v423 = vadd.f32 %v359, %v407
        %v424 = vadd.f32 %v360, %v408
        %v425 = vadd.f32 %v361, %v409
        %v426 = vadd.f32 %v362, %v410
        %v427 = vadd.f32 %v363, %v411
        %v428 = vadd.f32 %v364, %v412
        %v429 = vadd.f32 %v365, %v413
        %v430 = vadd.f32 %v366, %v414
        %431 = vst [vmem:[%s200] sm:$0xff] %v415
        %432 = vst [vmem:[%s200 + $0x8] sm:$0xff] %v416
        %433 = vst [vmem:[%s200 + $0x10] sm:$0xff] %v417
        %434 = vst [vmem:[%s200 + $0x18] sm:$0xff] %v418
        %435 = vst [vmem:[%s200 + $0x20] sm:$0xff] %v419
        %436 = vst [vmem:[%s200 + $0x28] sm:$0xff] %v420
        %437 = vst [vmem:[%s200 + $0x30] sm:$0xff] %v421
        %438 = vst [vmem:[%s200 + $0x38] sm:$0xff] %v422
        %439 = vst [vmem:[%s200 + $0x40] sm:$0xff] %v423
        %440 = vst [vmem:[%s200 + $0x48] sm:$0xff] %v424
        %441 = vst [vmem:[%s200 + $0x50] sm:$0xff] %v425
        %442 = vst [vmem:[%s200 + $0x58] sm:$0xff] %v426
        %443 = vst [vmem:[%s200 + $0x60] sm:$0xff] %v427
        %444 = vst [vmem:[%s200 + $0x68] sm:$0xff] %v428
        %445 = vst [vmem:[%s200 + $0x70] sm:$0xff] %v429
        %446 = vst [vmem:[%s200 + $0x78] sm:$0xff] %v430
        %s447 = sand.u32 %s82, 1
        %s448 = scalar_lea.sflag [#allocation4], %s447
        %s449 = sand.u32 %s82, 1
        %s450 = smul.addr %s449, 128
        %s451 = scalar_lea.vmem [#allocation7], %s450
        // Predicated region
        $region37: #{tpu_custom_call.1} parent=27 // pred_check
          %p452 = pneg %p92
        $region38: #{tpu_custom_call.1} parent=27 // pred_check_branch
          %454 = sbr.rel (%p452) target = $region40
        $region39: #{tpu_custom_call.1} parent=27 // pred_region
          %s455 = smul.u32 4, %s22
          %s457 = ssub.s32 2048, 2048
          %458 = vsyncadd %s448, %s457
          %s459 = smul.addr %s455, 4
          %s460 = smul.addr %s459, 128
          %s461 = scalar_lea.hbm %s2, %s460
          %s462 = sshll.u32 %s451, 4
          %s463 = int_to_ptr.vmem [resolvable:$true] %s462
          %468 = dma.vmem_to_hbm [thread:$0]  %s463, 2048, %s461, %s448, 512, 512, 32
        $region40: #{tpu_custom_call.1} parent=27 // pred_fallthru
          _
      $region28: #{tpu_custom_call.1} parent=5 // pred_fallthru
        _
      %p469 = scmp.le.s32.totalorder 2, %s17
      // Predicated region
      $region41: #{tpu_custom_call.1} parent=5 // pred_check
        %p470 = pneg %p469
      $region42: #{tpu_custom_call.1} parent=5 // pred_check_branch
        %472 = sbr.rel (%p470) target = $region44
      $region43: #{tpu_custom_call.1} parent=5 // pred_region
        %s473 = ssub.s32 %s17, 2
        // Predicated region
        $region45: #{tpu_custom_call.1} parent=43 // pred_check
          %p474 = pneg %p98
        $region46: #{tpu_custom_call.1} parent=43 // pred_check_branch
          %476 = sbr.rel (%p474) target = $region48
        $region47: #{tpu_custom_call.1} parent=43 // pred_region
          %s477 = sand.u32 %s83, 1
          %s478 = scalar_lea.sflag [#allocation4], %s477
          %s479 = sand.u32 %s83, 1
          %s480 = smul.addr %s479, 128
          %s481 = scalar_lea.vmem [#allocation7], %s480
          %482 = dma.done %s478, 2048
        $region48: #{tpu_custom_call.1} parent=43 // pred_fallthru
          _
      $region44: #{tpu_custom_call.1} parent=5 // pred_fallthru
        _
    $region6: #{tpu_custom_call.1} parent=1 // loop_footer
      %s21 = sadd.s32 1, %s17
    $region7: #{tpu_custom_call.1} parent=1 // loop_footer_branch
      %16 = sbr.rel target = $region3
    $region8: #{tpu_custom_call.1} parent=1 // loop_exit
      _
    %483 = vsyncpa [#allocation3], 1
    %s484 = scalar_lea.sflag [#allocation3], 1
    %485 = vsyncpa %s484, 1
    %486 = vsyncpa [#allocation6], 1
    %s487 = scalar_lea.sflag [#allocation6], 1
    %488 = vsyncpa %s487, 1
    %489 = vsyncpa [#allocation4], 1
    %s490 = scalar_lea.sflag [#allocation4], 1
    %491 = vsyncpa %s490, 1

</llo_original>
